<compile_context>
chip_gen: v6e
topology: v6e:2x2x1
jax: 0.10.0
libtpu: 0.0.40
codegen_flags: <defaults>
</compile_context>

<pallas_src>
import functools

import jax
import jax.numpy as jnp
from jax.experimental import pallas as pl
from jax.experimental.pallas import tpu as pltpu


def constraint_loss_kernel(mt_ref, mu_ref, c_ref, o_ref, *, scale):
    """mt_ref: (dim_condition, n_constraints)  -- M transposed (lane-major in nC)
       mu_ref: (dim_condition, 1)
       c_ref : (1, n_constraints)
       o_ref : (1, 1) SMEM scalar output."""
    mt = mt_ref[...].astype(jnp.float32)
    mu = mu_ref[...].astype(jnp.float32)
    c = c_ref[...].astype(jnp.float32)

    # (M @ mu)^T computed on the VPU: broadcast-multiply + reduce -> (1, nC).
    mv = jnp.sum(mt * mu, axis=0, keepdims=True)

    # gap = relu(M @ mu - c), lane-major (1, nC).
    gap = jnp.maximum(mv - c, 0.0)

    # `scale` folds alpha (and 1/n_constraints for the p_norm==2 mean) at trace
    # time, so both p_norm branches are the same sum-of-squares in-kernel.
    cons = scale * jnp.sum(gap * gap)
    o_ref[0, 0] = cons


def _base_mu_f(*, X=None, out=None, sensitive=None, y=None, dim_condition):
    # TODO(synk): PyTorch base-class mu_f returns zeros(n_constraints), which is
    # shape-inconsistent with torch.mv(M[nC, dim], mu); we return the consistent
    # zeros(dim_condition) (value identical: all zeros, loss unchanged).
    del X, out, sensitive, y
    return jnp.zeros((dim_condition,), jnp.float32)


def constraint_loss(out, sensitive, M, c, *, alpha=1.0, p_norm=2,
                    X=None, y=None, mu_f=None):
    """JAX wrapper reproducing ConstraintLoss.forward (base class)."""
    # Glue from the PyTorch forward. These are pure reshapes / elementwise ops
    # that do NOT feed the returned loss because the base-class mu_f ignores its
    # inputs; they are therefore elided from the kernel (no HBM->VMEM DMA, no
    # lane-sparse sigmoid).
    sensitive = sensitive.reshape(out.shape)
    if y is not None:
        y = y.reshape(out.shape)
    # TODO(synk): torch.sigmoid(out) is computed in the PyTorch forward but only
    # feeds mu_f (zeros in the base class); a mu_f subclass that actually uses
    # out/sensitive would need them wired back into mu_f below.

    M = jnp.asarray(M)
    n_constraints, dim_condition = M.shape

    if mu_f is None:
        mu = _base_mu_f(X=X, out=out, sensitive=sensitive, y=y,
                        dim_condition=dim_condition)
    else:
        mu = jnp.asarray(mu_f(X=X, out=out, sensitive=sensitive, y=y))
    mu = mu.reshape(dim_condition)

    # Fold alpha (and the mean's 1/nC) into one static scalar.
    scale = float(alpha) / n_constraints if p_norm == 2 else float(alpha)
    kernel = functools.partial(constraint_loss_kernel, scale=scale)

    res = pl.pallas_call(
        kernel,
        out_shape=jax.ShapeDtypeStruct((1, 1), jnp.float32),
        in_specs=[pl.BlockSpec(memory_space=pltpu.MemorySpace.VMEM)] * 3,
        out_specs=pl.BlockSpec(memory_space=pltpu.MemorySpace.SMEM),
    )(
        M.T,                                   # (dim_condition, n_constraints)
        mu.reshape(dim_condition, 1),          # (dim_condition, 1)
        jnp.asarray(c).reshape(1, n_constraints),  # (1, n_constraints)
    )
    return res[0, 0]  # scalar loss


if __name__ == "__main__":
    # Module hyper-params (defaults): n_class=2, alpha=1, p_norm=2
    n_class = 2
    alpha = 1.0
    p_norm = 2
    n_constraints = 2
    dim_condition = n_class + 1  # = 3

    key = jax.random.PRNGKey(0)
    k_out, k_sens, k_m, k_c, k_mu = jax.random.split(key, 5)
    batch = 8
    out = jax.random.normal(k_out, (batch, 1), dtype=jnp.float32)        # logits
    sensitive = (jax.random.uniform(k_sens, (batch,)) > 0.5).astype(jnp.float32)

    # --- Test 1: module defaults (M, c zeros; base-class mu_f -> zeros) -----
    M0 = jnp.zeros((n_constraints, dim_condition), dtype=jnp.float32)
    c0 = jnp.zeros((n_constraints,), dtype=jnp.float32)
    cons0 = jax.block_until_ready(
        constraint_loss(out, sensitive, M0, c0, alpha=alpha, p_norm=p_norm))
    mu0 = jnp.zeros((dim_condition,), jnp.float32)
    gap0 = jnp.maximum(M0 @ mu0 - c0, 0.0)
    ref0 = alpha * jnp.mean(gap0 ** 2)
    assert jnp.allclose(cons0, ref0, atol=1e-6), (cons0, ref0)

    # --- Test 2: non-trivial M / c / mu (exercises matvec + relu + reduce) --
    M1 = jax.random.normal(k_m, (n_constraints, dim_condition), dtype=jnp.float32)
    c1 = jax.random.normal(k_c, (n_constraints,), dtype=jnp.float32)
    mu1 = jax.random.normal(k_mu, (dim_condition,), dtype=jnp.float32)
    cons1 = jax.block_until_ready(
        constraint_loss(out, sensitive, M1, c1, alpha=alpha, p_norm=p_norm,
                        mu_f=lambda **kw: mu1))
    gap1 = jnp.maximum(M1 @ mu1 - c1, 0.0)
    ref1 = alpha * jnp.mean(gap1 ** 2)
    assert jnp.allclose(cons1, ref1, atol=1e-6), (cons1, ref1)

    print("KERNEL_OK")
</pallas_src>

<mosaic_0001>
module attributes {stable_mosaic.version = 11 : i64} {
  func.func @constraint_loss_kernel(%arg0: memref<3x2xf32, #tpu.memory_space<vmem>>, %arg1: memref<3x1xf32, #tpu.memory_space<vmem>>, %arg2: memref<1x2xf32, #tpu.memory_space<vmem>>, %arg3: memref<1x1xf32, #tpu.memory_space<smem>>) attributes {dimension_semantics = [], scalar_prefetch = 0 : i64, scratch_operands = 0 : i64, tpu.core_type = #tpu.core_type<tc>} {
    %c0 = arith.constant 0 : index
    %c0_0 = arith.constant 0 : index
    %0 = vector.load %arg0[%c0, %c0_0] : memref<3x2xf32, #tpu.memory_space<vmem>>, vector<3x2xf32>
    %c0_1 = arith.constant 0 : index
    %c0_2 = arith.constant 0 : index
    %1 = vector.load %arg1[%c0_1, %c0_2] : memref<3x1xf32, #tpu.memory_space<vmem>>, vector<3x1xf32>
    %c0_3 = arith.constant 0 : index
    %c0_4 = arith.constant 0 : index
    %2 = vector.load %arg2[%c0_3, %c0_4] : memref<1x2xf32, #tpu.memory_space<vmem>>, vector<1x2xf32>
    %3 = vector.broadcast %1 : vector<3x1xf32> to vector<3x2xf32>
    %4 = arith.mulf %0, %3 : vector<3x2xf32>
    %cst = arith.constant dense<0.000000e+00> : vector<2xf32>
    %5 = vector.multi_reduction <add>, %4, %cst [0] : vector<3x2xf32> to vector<2xf32>
    %6 = vector.shape_cast %5 : vector<2xf32> to vector<1x2xf32>
    %7 = arith.subf %6, %2 : vector<1x2xf32>
    %cst_5 = arith.constant 0.000000e+00 : f32
    %8 = vector.broadcast %cst_5 : f32 to vector<1x2xf32>
    %9 = arith.maximumf %7, %8 : vector<1x2xf32>
    %10 = arith.mulf %9, %9 : vector<1x2xf32>
    %11 = vector.shape_cast %10 : vector<1x2xf32> to vector<1x1x2xf32>
    %cst_6 = arith.constant dense<0.000000e+00> : vector<1xf32>
    %12 = vector.multi_reduction <add>, %11, %cst_6 [1, 2] : vector<1x1x2xf32> to vector<1xf32>
    %13 = vector.shape_cast %12 : vector<1xf32> to vector<1x1x1xf32>
    %14 = vector.extract %13[0, 0, 0] : f32 from vector<1x1x1xf32>
    %cst_7 = arith.constant 5.000000e-01 : f32
    %15 = arith.mulf %cst_7, %14 : f32
    %c0_8 = arith.constant 0 : index
    %c0_9 = arith.constant 0 : index
    %16 = memref.load %arg3[%c0_8, %c0_9] : memref<1x1xf32, #tpu.memory_space<smem>>
    memref.store %15, %arg3[%c0_8, %c0_9] : memref<1x1xf32, #tpu.memory_space<smem>>
    return
  }
}

</mosaic_0001>

<llo_original>
// kernel: tpu_custom_call.1
$region0: #{tpu_custom_call.1}
  #allocation0 [shape = 'u32[]', space=smem, size = 0x4, offset = 0x4, fixed_abs, tag = 'smem constant byte address 0x4 - core index']
  #allocation1 [shape = 'u32[144,128]{1,0:T(1,128)}', space=vmem, size = 0x12000, scoped, tag = 'internal scratch']
  %s0 = inlined_call_operand.vmem [shape: f32[3,2], index: 0, kind: input, shape index: {}]
  %s1 = inlined_call_operand.vmem [shape: f32[3,1], index: 1, kind: input, shape index: {}]
  %s2 = inlined_call_operand.vmem [shape: f32[1,2], index: 2, kind: input, shape index: {}]
  %s3 = inlined_call_operand.hbm [shape: f32[1,1], index: 3, kind: output, shape index: {}]
  %s4 = sld [smem:[#allocation0]]
  $region22: #{tpu_custom_call.1} parent=0
    _
  %s6 = ssub.s32 1, %s4
  %s7 = scalar_select 0, %s6, %s4
  $region1: #{tpu_custom_call.1} parent=0
    #allocation2 [shape = 'u8[512]{0}', space=smem, size = 0x200, scoped, tag = 'output window, operand 0, single buffered']
    #allocation3 [shape = 's32[1]{0}', space=sflag, size = 0x4, scoped, tag = 'scoped memory for tpu_custom_call.1']
    %8 = vsyncpa [#allocation3], 0
    // Predicated region
    $region2: #{tpu_custom_call.1} parent=1 // pred_check
      _
    $region3: #{tpu_custom_call.1} parent=1 // pred_check_branch
      %10 = sbr.rel (0) target = $region5
    $region4: #{tpu_custom_call.1} parent=1 // pred_region
      _
    $region5: #{tpu_custom_call.1} parent=1 // pred_fallthru
      _
    // Predicated region
    $region6: #{tpu_custom_call.1} parent=1 // pred_check
      _
    $region7: #{tpu_custom_call.1} parent=1 // pred_check_branch
      %12 = sbr.rel (0) target = $region9
    $region8: #{tpu_custom_call.1} parent=1 // pred_region
      _
    $region9: #{tpu_custom_call.1} parent=1 // pred_fallthru
      _
    // Predicated region
    $region10: #{tpu_custom_call.1} parent=1 // pred_check
      _
    $region11: #{tpu_custom_call.1} parent=1 // pred_check_branch
      %14 = sbr.rel (0) target = $region13
    $region12: #{tpu_custom_call.1} parent=1 // pred_region
      _
    $region13: #{tpu_custom_call.1} parent=1 // pred_fallthru
      _
    %v15 = vld [vmem:[%s0] sm:$0x7]
    %v16 = vld [vmem:[%s1] sm:$0x7]
    %v17 = vld [vmem:[%s2] sm:$0x1]
    %19 = vset.pattern.permute.xlu0 0
    %20 = vperm.xlu0 %19, %v16
    %v21 = vpop.permute.xlu0 %20
    %v23 = vmul.f32 %v15, %v21
    %vm24 = vcmask 10240
    %v25 = vsel %vm24, %v23, 0.0
    %v26 = vrot.slane %v25, 4
    %v27 = vadd.f32 %v25, %v26
    %v28 = vrot.slane %v27, 2
    %v29 = vadd.f32 %v27, %v28
    %v30 = vrot.slane %v29, 1
    %v31 = vadd.f32 %v29, %v30
    %v32 = vsub.f32 %v31, %v17
    %v33 = vmax.f32 %v32, 0.0
    %v34 = vmul.f32 %v33, %v33
    %vm35 = vcmask 8192
    %v36 = vsel %vm35, %v34, 0.0
    %37 = vadd.xlane.f32.xlu0 %v36
    %v38 = vpop.xlane.xlu0 %37
    %v39 = vrot.slane %v38, 4
    %v40 = vadd.f32 %v38, %v39
    %v41 = vrot.slane %v40, 2
    %v42 = vadd.f32 %v40, %v41
    %v43 = vrot.slane %v42, 1
    %v44 = vadd.f32 %v42, %v43
    %s45 = vtos %v44
    %s46 = smul.f32 %s45, 0.5
    %s47 = scalar_lea.smem [#allocation2], 0
    %48 = sst [smem:[%s47]] %s46
    // Predicated region
    $region14: #{tpu_custom_call.1} parent=1 // pred_check
      _
    $region15: #{tpu_custom_call.1} parent=1 // pred_check_branch
      %50 = sbr.rel (0) target = $region17
    $region16: #{tpu_custom_call.1} parent=1 // pred_region
      %s52 = ssub.s32 16, 16
      %53 = vsyncadd [#allocation3], %s52
      %56 = dma.smem_to_hbm [#allocation2], 16, %s3, [#allocation3]
    $region17: #{tpu_custom_call.1} parent=1 // pred_fallthru
      _
    // Predicated region
    $region18: #{tpu_custom_call.1} parent=1 // pred_check
      _
    $region19: #{tpu_custom_call.1} parent=1 // pred_check_branch
      %58 = sbr.rel (0) target = $region21
    $region20: #{tpu_custom_call.1} parent=1 // pred_region
      %59 = dma.done [#allocation3], 16
    $region21: #{tpu_custom_call.1} parent=1 // pred_fallthru
      _
    %60 = sfence
    %61 = vsyncpa [#allocation3], 1

</llo_original>
